<compile_context>
chip_gen: v6e
topology: v6e:2x2x1
jax: 0.10.0
libtpu: 0.0.40
codegen_flags: <defaults>
</compile_context>

<pallas_src>
import functools

import jax
import jax.numpy as jnp
from jax.experimental import pallas as pl
from jax.experimental.pallas import tpu as pltpu


def _im2col_t(x, k, stride, padding, dilation):
    """x: (N, C, H, W) -> patches_t (C*k*k, N*H_out*W_out), K ordered (C, kh, kw)."""
    N, C, H, W = x.shape
    xp = jnp.pad(x, ((0, 0), (0, 0), (padding, padding), (padding, padding)))
    Hp, Wp = H + 2 * padding, W + 2 * padding
    H_out = (Hp - dilation * (k - 1) - 1) // stride + 1
    W_out = (Wp - dilation * (k - 1) - 1) // stride + 1
    cols = []
    for kh in range(k):
        for kw in range(k):
            h0 = kh * dilation
            w0 = kw * dilation
            patch = xp[:, :,
                       h0:h0 + stride * (H_out - 1) + 1:stride,
                       w0:w0 + stride * (W_out - 1) + 1:stride]  # (N, C, H_out, W_out)
            cols.append(patch)
    cols = jnp.stack(cols, axis=0).reshape(k, k, N, C, H_out, W_out)
    # -> (C, kh, kw, N, H_out, W_out): K-major layout so the M axis is the lane axis.
    cols = cols.transpose(3, 0, 1, 2, 4, 5)
    patches_t = cols.reshape(C * k * k, N * H_out * W_out)
    return patches_t, H_out, W_out


def _pick_tm(M, K, out_ch, in_itemsize, out_itemsize):
    """Largest M-tile that keeps double-buffered streaming buffers ~16 MiB."""
    budget = 16 << 20
    fixed = 2 * out_ch * (K + 1) * 4                              # fused weight + bias
    per_col = 2 * (K * in_itemsize + out_ch * out_itemsize)       # dbl-buffered patches + out
    tm = max(budget - fixed, per_col * 128) // per_col
    tm = min(tm, 2048)                           # diminishing returns past ~1-2K rows
    tm = min(tm, max(pl.cdiv(M, 2), 128))        # keep >= 2 grid steps (v7x: 2 TCs)
    tm = max(128, (tm // 128) * 128)             # lane-dense blocks: multiple of 128
    return int(tm)


def _lowrank_kernel(p_ref, w_ref, b_ref, o_ref):
    # Single fused GEMM: (O, K) @ (K, tm) -> (O, tm), f32 accumulation on the MXU.
    # Output tile is lane-dense (last dim = tm, multiple of 128) -> unmasked stores.
    y = jnp.dot(w_ref[...], p_ref[...], preferred_element_type=jnp.float32)
    o_ref[...] = (y + b_ref[...]).astype(o_ref.dtype)


def low_rank_conv2d_forward(x, w0, w1, bias, *, stride=1, padding=0,
                            dilation=1, groups=1, tm=None, compute_dtype=None):
    """Matches LowRankConv2d.forward (keep_singular_values_separated=False)."""
    assert groups == 1  # TODO(synk): grouped low-rank conv not implemented in the kernel.
    N, C, H, W = x.shape
    rank = w0.shape[0]
    k = w0.shape[2]
    out_channels = w1.shape[0]

    patches_t, H_out, W_out = _im2col_t(x, k, stride, padding, dilation)
    K, M = patches_t.shape

    # Fuse the two low-rank matmuls once in the wrapper: W = (O, r) @ (r, K).
    w_fused_t = jnp.dot(w1.reshape(out_channels, rank).astype(jnp.float32),
                        w0.reshape(rank, C * k * k).astype(jnp.float32))  # (O, K)
    if bias is None:
        bias = jnp.zeros((out_channels,), jnp.float32)
    b_col = bias.astype(jnp.float32).reshape(out_channels, 1)

    if compute_dtype is not None:
        # Halve the dominant HBM stream; accumulation stays f32 inside the kernel.
        patches_t = patches_t.astype(compute_dtype)
        w_fused_t = w_fused_t.astype(compute_dtype)

    out_dtype = x.dtype
    tm_v = tm if tm is not None else _pick_tm(
        M, K, out_channels, patches_t.dtype.itemsize, jnp.dtype(out_dtype).itemsize)
    grid = (pl.cdiv(M, tm_v),)   # no full-array pad; ragged last tile is masked

    out_t = pl.pallas_call(
        _lowrank_kernel,
        out_shape=jax.ShapeDtypeStruct((out_channels, M), out_dtype),
        grid_spec=pltpu.PrefetchScalarGridSpec(
            num_scalar_prefetch=0,
            grid=grid,
            in_specs=[
                pl.BlockSpec((K, tm_v), lambda i: (0, i)),          # streamed patches
                pl.BlockSpec((out_channels, K), lambda i: (0, 0)),  # fused weight (resident)
                pl.BlockSpec((out_channels, 1), lambda i: (0, 0)),  # bias (resident)
            ],
            out_specs=pl.BlockSpec((out_channels, tm_v), lambda i: (0, i)),
        ),
        compiler_params=pltpu.CompilerParams(
            dimension_semantics=("parallel",),
            # Above the 16/32 MiB scoped defaults, safely under v7x's 64 MiB physical.
            vmem_limit_bytes=48 * 1024 * 1024),
    )(patches_t, w_fused_t, b_col)

    # (O, M) -> (N, O, H_out, W_out), matching the PyTorch module's NCHW output.
    out = out_t.reshape(out_channels, N, H_out, W_out).transpose(1, 0, 2, 3)
    return out


def _reference(x, w0, w1, bias, stride, padding, dilation):
    conv_out = jax.lax.conv_general_dilated(
        x, w0, window_strides=(stride, stride),
        padding=[(padding, padding), (padding, padding)],
        rhs_dilation=(dilation, dilation),
        dimension_numbers=("NCHW", "OIHW", "NCHW"))
    out_channels, rank = w1.shape[0], w1.shape[1]
    y = jnp.einsum("nrhw,or->nohw", conv_out, w1.reshape(out_channels, rank))
    return y + bias.reshape(1, -1, 1, 1)


if __name__ == "__main__":
    # Module config (synthetic, deterministic init — mirrors __init__ shapes).
    in_channels, out_channels, kernel_size, rank = 4, 8, 3, 4
    stride, padding, dilation, groups = 1, 1, 1, 1
    N, H, W = 2, 16, 16

    key = jax.random.PRNGKey(0)
    kx, k0, k1, kb = jax.random.split(key, 4)
    x = jax.random.normal(kx, (N, in_channels, H, W), jnp.float32)
    w0 = jax.random.normal(k0, (rank, in_channels, kernel_size, kernel_size), jnp.float32)
    w1 = jax.random.normal(k1, (out_channels, rank, 1, 1), jnp.float32)
    bias = jax.random.normal(kb, (out_channels,), jnp.float32)

    # Jit the whole forward so im2col, weight fusion and the kernel live in one
    # XLA program (no extra HBM round-trips such as a pad copy).
    fwd = jax.jit(functools.partial(low_rank_conv2d_forward, stride=stride,
                                    padding=padding, dilation=dilation, groups=groups))
    out = jax.block_until_ready(fwd(x, w0, w1, bias))

    ref = _reference(x, w0, w1, bias, stride, padding, dilation)
    assert out.shape == ref.shape == (N, out_channels, H, W)
    assert jnp.allclose(out, ref, rtol=1e-4, atol=5e-4), "f32 mismatch vs reference"

    # Optional reduced-precision streaming path (halves the dominant HBM stream).
    fwd_bf16 = jax.jit(functools.partial(
        low_rank_conv2d_forward, stride=stride, padding=padding, dilation=dilation,
        groups=groups, compute_dtype=jnp.bfloat16))
    out_bf16 = jax.block_until_ready(fwd_bf16(x, w0, w1, bias))
    rel_err = jnp.max(jnp.abs(out_bf16 - ref)) / jnp.max(jnp.abs(ref))
    assert rel_err < 3e-2, f"bf16 mismatch vs reference (rel_err={rel_err})"

    print("KERNEL_OK")
</pallas_src>

<mosaic_0001>
module attributes {stable_mosaic.version = 11 : i64} {
  func.func @_lowrank_kernel(%arg0: i32, %arg1: memref<36x256xf32, #tpu.memory_space<vmem>>, %arg2: memref<8x36xf32, #tpu.memory_space<vmem>>, %arg3: memref<8x1xf32, #tpu.memory_space<vmem>>, %arg4: memref<8x256xf32, #tpu.memory_space<vmem>>) attributes {dimension_semantics = [#tpu.dimension_semantics<parallel>], iteration_bounds = array<i64: 2>, scalar_prefetch = 0 : i64, scratch_operands = 0 : i64, tpu.core_type = #tpu.core_type<tc>, window_params = [{transform_indices = @transform_0, window_bounds = array<i64: 36, 256>}, {pipeline_mode = #tpu.pipeline_mode<synchronous>, transform_indices = @transform_1, window_bounds = array<i64: 8, 36>}, {pipeline_mode = #tpu.pipeline_mode<synchronous>, transform_indices = @transform_2, window_bounds = array<i64: 8, 1>}, {transform_indices = @transform_3, window_bounds = array<i64: 8, 256>}]} {
    %c0 = arith.constant 0 : index
    %c0_0 = arith.constant 0 : index
    %0 = vector.load %arg2[%c0, %c0_0] : memref<8x36xf32, #tpu.memory_space<vmem>>, vector<8x36xf32>
    %c0_1 = arith.constant 0 : index
    %c0_2 = arith.constant 0 : index
    %1 = vector.load %arg1[%c0_1, %c0_2] : memref<36x256xf32, #tpu.memory_space<vmem>>, vector<36x256xf32>
    %cst = arith.constant dense<0.000000e+00> : vector<8x256xf32>
    %2 = tpu.matmul %0, %1, %cst {dimension_numbers = #tpu.dot_dimension_numbers<[1], [0], [0], [1], [0, 0, 1, 1], [], []>} : vector<8x36xf32>, vector<36x256xf32>, vector<8x256xf32> -> vector<8x256xf32>
    %c0_3 = arith.constant 0 : index
    %c0_4 = arith.constant 0 : index
    %3 = vector.load %arg3[%c0_3, %c0_4] : memref<8x1xf32, #tpu.memory_space<vmem>>, vector<8x1xf32>
    %4 = vector.broadcast %3 : vector<8x1xf32> to vector<8x256xf32>
    %5 = arith.addf %2, %4 : vector<8x256xf32>
    %c0_5 = arith.constant 0 : index
    %c0_6 = arith.constant 0 : index
    %6 = vector.load %arg4[%c0_5, %c0_6] : memref<8x256xf32, #tpu.memory_space<vmem>>, vector<8x256xf32>
    tpu.vector_store %arg4[%c0_5, %c0_6], %5 {strides = array<i32>} : memref<8x256xf32, #tpu.memory_space<vmem>>, vector<8x256xf32>,
    return
  }
  func.func @transform_0(%arg0: i32) -> (i32, i32) {
    %c0_i32 = arith.constant 0 : i32
    %c0_i32_0 = arith.constant 0 : i32
    return %c0_i32, %arg0 : i32, i32
  }
  func.func @transform_1(%arg0: i32) -> (i32, i32) {
    %c0_i32 = arith.constant 0 : i32
    %c0_i32_0 = arith.constant 0 : i32
    %c0_i32_1 = arith.constant 0 : i32
    return %c0_i32, %c0_i32_0 : i32, i32
  }
  func.func @transform_2(%arg0: i32) -> (i32, i32) {
    %c0_i32 = arith.constant 0 : i32
    %c0_i32_0 = arith.constant 0 : i32
    %c0_i32_1 = arith.constant 0 : i32
    return %c0_i32, %c0_i32_0 : i32, i32
  }
  func.func @transform_3(%arg0: i32) -> (i32, i32) {
    %c0_i32 = arith.constant 0 : i32
    %c0_i32_0 = arith.constant 0 : i32
    return %c0_i32, %arg0 : i32, i32
  }
}

</mosaic_0001>

<llo_original>
// kernel: low_rank_conv2d_forward.1
$region0: #{low_rank_conv2d_forward.1}
  #allocation0 [shape = 'u32[]', space=smem, size = 0x4, offset = 0x4, fixed_abs, tag = 'smem constant byte address 0x4 - core index']
  #allocation1 [shape = 'u32[144,128]{1,0:T(1,128)}', space=vmem, size = 0x12000, scoped, tag = 'internal scratch']
  %s0 = inlined_call_operand.vmem [shape: f32[36,512], index: 0, kind: input, shape index: {}]
  %s1 = inlined_call_operand.vmem [shape: f32[8,36], index: 1, kind: input, shape index: {}]
  %s2 = inlined_call_operand.vmem [shape: f32[8,1], index: 2, kind: input, shape index: {}]
  %s3 = inlined_call_operand.vmem [shape: f32[8,512], index: 3, kind: output, shape index: {}]
  %s4 = sld [smem:[#allocation0]]
  $region68: #{low_rank_conv2d_forward.1} parent=0
    _
  %s6 = ssub.s32 1, %s4
  %s7 = scalar_select 0, %s6, %s4
  $region1: #{low_rank_conv2d_forward.1} parent=0
    #allocation2 [shape = 'u8[81920]{0}', space=vmem, size = 0x14000, scoped, tag = 'input window, operand 0']
    loop: start=0, step=1, limit=4
    $region2: #{low_rank_conv2d_forward.1} parent=1 // loop_pre_header
      _
    $region3: #{low_rank_conv2d_forward.1} parent=1 // loop_header
      %s9 = sphi 0, %s13
      %p10 = scmp.ge.s32.totalorder %s9, 4
      %s19 = sphi 0, %s21
      %s22 = sphi 0, %s19
      %s23 = sphi 0, %s22
      %s39 = sphi 0, %s23
      %s43 = sphi 0, %s43
      %s45 = sphi 0, %s43
      %s46 = sphi 0, %s45
      %s60 = sphi 0, %s46
      %s64 = sphi 0, %s64
      %s66 = sphi 0, %s64
      %s67 = sphi 0, %s66
      %s81 = sphi 0, %s67
      %s87 = sphi 0, %s89
      %s90 = sphi 0, %s87
      %s91 = sphi 0, %s90
      %s107 = sphi 0, %s91
    $region4: #{low_rank_conv2d_forward.1} parent=1 // loop_header_branch
      %12 = sbr.rel (%p10) target = $region8
    $region5: #{low_rank_conv2d_forward.1} parent=1 // loop_body
      %s14 = ssub.s32 %s9, 1
      %s15 = ssub.s32 %s9, 2
      %s16 = sadd.s32 %s9, 1
      %s17 = ssub.s32 %s9, %s16
      %p18 = scmp.eq.s32.totalorder %s17, 0
      %s20 = sadd.s32 %s19, 1
      %s21 = scalar_select %p18, %s19, %s20
      %p24 = pneg %p18
      %p25 = scmp.eq.s32.totalorder %s9, 1
      %p26 = por %p24, %p25
      %p27 = scmp.ne.s32.totalorder %s19, %s22
      %p28 = scmp.eq.s32.totalorder %s9, 0
      %p29 = por %p27, %p28
      %p30 = scmp.ne.s32.totalorder %s19, %s22
      %p31 = scmp.eq.s32.totalorder %s14, 1
      %p32 = por %p30, %p31
      %p33 = scmp.ne.s32.totalorder %s22, %s23
      %p34 = scmp.eq.s32.totalorder %s14, 0
      %p35 = por %p33, %p34
      %p36 = scmp.ne.s32.totalorder %s22, %s23
      %p37 = scmp.eq.s32.totalorder %s15, 1
      %p38 = por %p36, %p37
      %p40 = scmp.ne.s32.totalorder %s23, %s39
      %p41 = scmp.eq.s32.totalorder %s15, 0
      %p42 = por %p40, %p41
      %s44 = sadd.s32 %s43, 1
      %p47 = scmp.eq.s32.totalorder %s9, 1
      %p48 = scmp.ne.s32.totalorder %s43, %s45
      %p49 = scmp.eq.s32.totalorder %s9, 0
      %p50 = por %p48, %p49
      %p51 = scmp.ne.s32.totalorder %s43, %s45
      %p52 = scmp.eq.s32.totalorder %s14, 1
      %p53 = por %p51, %p52
      %p54 = scmp.ne.s32.totalorder %s45, %s46
      %p55 = scmp.eq.s32.totalorder %s14, 0
      %p56 = por %p54, %p55
      %p57 = scmp.ne.s32.totalorder %s45, %s46
      %p58 = scmp.eq.s32.totalorder %s15, 1
      %p59 = por %p57, %p58
      %p61 = scmp.ne.s32.totalorder %s46, %s60
      %p62 = scmp.eq.s32.totalorder %s15, 0
      %p63 = por %p61, %p62
      %s65 = sadd.s32 %s64, 1
      %p68 = scmp.eq.s32.totalorder %s9, 1
      %p69 = scmp.ne.s32.totalorder %s64, %s66
      %p70 = scmp.eq.s32.totalorder %s9, 0
      %p71 = por %p69, %p70
      %p72 = scmp.ne.s32.totalorder %s64, %s66
      %p73 = scmp.eq.s32.totalorder %s14, 1
      %p74 = por %p72, %p73
      %p75 = scmp.ne.s32.totalorder %s66, %s67
      %p76 = scmp.eq.s32.totalorder %s14, 0
      %p77 = por %p75, %p76
      %p78 = scmp.ne.s32.totalorder %s66, %s67
      %p79 = scmp.eq.s32.totalorder %s15, 1
      %p80 = por %p78, %p79
      %p82 = scmp.ne.s32.totalorder %s67, %s81
      %p83 = scmp.eq.s32.totalorder %s15, 0
      %p84 = por %p82, %p83
      %s85 = ssub.s32 %s9, %s16
      %p86 = scmp.eq.s32.totalorder %s85, 0
      %s88 = sadd.s32 %s87, 1
      %s89 = scalar_select %p86, %s87, %s88
      %p92 = pneg %p86
      %p93 = scmp.eq.s32.totalorder %s9, 1
      %p94 = por %p92, %p93
      %p95 = scmp.ne.s32.totalorder %s87, %s90
      %p96 = scmp.eq.s32.totalorder %s9, 0
      %p97 = por %p95, %p96
      %p98 = scmp.ne.s32.totalorder %s87, %s90
      %p99 = scmp.eq.s32.totalorder %s14, 1
      %p100 = por %p98, %p99
      %p101 = scmp.ne.s32.totalorder %s90, %s91
      %p102 = scmp.eq.s32.totalorder %s14, 0
      %p103 = por %p101, %p102
      %p104 = scmp.ne.s32.totalorder %s90, %s91
      %p105 = scmp.eq.s32.totalorder %s15, 1
      %p106 = por %p104, %p105
      %p108 = scmp.ne.s32.totalorder %s91, %s107
      %p109 = scmp.eq.s32.totalorder %s15, 0
      %p110 = por %p108, %p109
      %p111 = scmp.le.s32.totalorder 1, %s9
      %p112 = scmp.lt.s32.totalorder %s9, 3
      %p113 = pnand %p111, %p112
      %p114 = pneg %p113
      // Predicated region
      $region9: #{low_rank_conv2d_forward.1} parent=5 // pred_check
        _
      $region10: #{low_rank_conv2d_forward.1} parent=5 // pred_check_branch
        %116 = sbr.rel (%p113) target = $region12
      $region11: #{low_rank_conv2d_forward.1} parent=5 // pred_region
        %s117 = ssub.s32 %s9, 1
        // Predicated region
        $region13: #{low_rank_conv2d_forward.1} parent=11 // pred_check
          %p118 = pneg %p56
        $region14: #{low_rank_conv2d_forward.1} parent=11 // pred_check_branch
          %120 = sbr.rel (%p118) target = $region16
        $region15: #{low_rank_conv2d_forward.1} parent=11 // pred_region
          _
        $region16: #{low_rank_conv2d_forward.1} parent=11 // pred_fallthru
          _
        // Predicated region
        $region17: #{low_rank_conv2d_forward.1} parent=11 // pred_check
          %p121 = pneg %p77
        $region18: #{low_rank_conv2d_forward.1} parent=11 // pred_check_branch
          %123 = sbr.rel (%p121) target = $region20
        $region19: #{low_rank_conv2d_forward.1} parent=11 // pred_region
          _
        $region20: #{low_rank_conv2d_forward.1} parent=11 // pred_fallthru
          _
      $region12: #{low_rank_conv2d_forward.1} parent=5 // pred_fallthru
        _
      %p124 = scmp.lt.s32.totalorder %s9, 2
      // Predicated region
      $region21: #{low_rank_conv2d_forward.1} parent=5 // pred_check
        %p125 = pneg %p124
      $region22: #{low_rank_conv2d_forward.1} parent=5 // pred_check_branch
        %127 = sbr.rel (%p125) target = $region24
      $region23: #{low_rank_conv2d_forward.1} parent=5 // pred_region
        // Predicated region
        $region25: #{low_rank_conv2d_forward.1} parent=23 // pred_check
          %p128 = pneg %p29
        $region26: #{low_rank_conv2d_forward.1} parent=23 // pred_check_branch
          %130 = sbr.rel (%p128) target = $region28
        $region27: #{low_rank_conv2d_forward.1} parent=23 // pred_region
          %s131 = sand.u32 %s19, 1
          %s132 = sand.u32 %s19, 1
          %s133 = smul.addr %s132, 80
          %s134 = scalar_lea.vmem [#allocation2], %s133
          %s135 = smul.u32 2, %s9
          %s136 = smul.addr %s135, 8
          %s137 = scalar_lea.vmem %s0, %s136
          // Predicated region
          $region29: #{low_rank_conv2d_forward.1} parent=27 // pred_check
            _
          $region30: #{low_rank_conv2d_forward.1} parent=27 // pred_check_branch
            %139 = sbr.rel (0) target = $region32
          $region31: #{low_rank_conv2d_forward.1} parent=27 // pred_region
            // Predicated region
            $region33: #{low_rank_conv2d_forward.1} parent=31 // pred_check
              _
            $region34: #{low_rank_conv2d_forward.1} parent=31 // pred_check_branch
              %141 = sbr.rel (0) target = $region36
            $region35: #{low_rank_conv2d_forward.1} parent=31 // pred_region
              loop: start=0, step=1, limit=1
              $region37: #{low_rank_conv2d_forward.1} parent=35 // loop_pre_header
                _
              $region38: #{low_rank_conv2d_forward.1} parent=35 // loop_header
                %s143 = sphi 0, %s147
                %p144 = scmp.ge.s32.totalorder %s143, 1
                %s148 = sphi %s137, %s137
                %s149 = sphi %s134, %s134
              $region39: #{low_rank_conv2d_forward.1} parent=35 // loop_header_branch
                %146 = sbr.rel (%p144) target = $region43
              $region40: #{low_rank_conv2d_forward.1} parent=35 // loop_body
                %v150 = vld [vmem:[%s148] sm:$0xff]
                %151 = vst [vmem:[%s149] sm:$0xff] %v150
                %v152 = vld [vmem:[%s148 + $0x8] sm:$0xff]
                %153 = vst [vmem:[%s149 + $0x8] sm:$0xff] %v152
                %v154 = vld [vmem:[%s148 + $0x20] sm:$0xff]
                %155 = vst [vmem:[%s149 + $0x10] sm:$0xff] %v154
                %v156 = vld [vmem:[%s148 + $0x28] sm:$0xff]
                %157 = vst [vmem:[%s149 + $0x18] sm:$0xff] %v156
                %v158 = vld [vmem:[%s148 + $0x40] sm:$0xff]
                %159 = vst [vmem:[%s149 + $0x20] sm:$0xff] %v158
                %v160 = vld [vmem:[%s148 + $0x48] sm:$0xff]
                %161 = vst [vmem:[%s149 + $0x28] sm:$0xff] %v160
                %v162 = vld [vmem:[%s148 + $0x60] sm:$0xff]
                %163 = vst [vmem:[%s149 + $0x30] sm:$0xff] %v162
                %v164 = vld [vmem:[%s148 + $0x68] sm:$0xff]
                %165 = vst [vmem:[%s149 + $0x38] sm:$0xff] %v164
                %v166 = vld [vmem:[%s148 + $0x80] sm:$0xff]
                %167 = vst [vmem:[%s149 + $0x40] sm:$0xff] %v166
                %v168 = vld [vmem:[%s148 + $0x88] sm:$0xff]
                %169 = vst [vmem:[%s149 + $0x48] sm:$0xff] %v168
              $region41: #{low_rank_conv2d_forward.1} parent=35 // loop_footer
                %s147 = sadd.s32 1, %s143
              $region42: #{low_rank_conv2d_forward.1} parent=35 // loop_footer_branch
                %142 = sbr.rel target = $region38
              $region43: #{low_rank_conv2d_forward.1} parent=35 // loop_exit
                _
            $region36: #{low_rank_conv2d_forward.1} parent=31 // pred_fallthru
              _
            // Predicated region
            $region44: #{low_rank_conv2d_forward.1} parent=31 // pred_check
              _
            $region45: #{low_rank_conv2d_forward.1} parent=31 // pred_check_branch
              %171 = sbr.rel target = $region47
            $region46: #{low_rank_conv2d_forward.1} parent=31 // pred_region
              _
            $region47: #{low_rank_conv2d_forward.1} parent=31 // pred_fallthru
              _
          $region32: #{low_rank_conv2d_forward.1} parent=27 // pred_fallthru
            _
          %172 = vnop
        $region28: #{low_rank_conv2d_forward.1} parent=23 // pred_fallthru
          _
      $region24: #{low_rank_conv2d_forward.1} parent=5 // pred_fallthru
        _
      %p173 = scmp.le.s32.totalorder 1, %s9
      %p174 = scmp.lt.s32.totalorder %s9, 3
      %p175 = pnand %p173, %p174
      %p176 = pneg %p175
      // Predicated region
      $region48: #{low_rank_conv2d_forward.1} parent=5 // pred_check
        _
      $region49: #{low_rank_conv2d_forward.1} parent=5 // pred_check_branch
        %178 = sbr.rel (%p175) target = $region51
      $region50: #{low_rank_conv2d_forward.1} parent=5 // pred_region
        %s179 = ssub.s32 %s9, 1
        %s180 = sand.u32 %s22, 1
        %s181 = sand.u32 %s22, 1
        %s182 = smul.addr %s181, 80
        %s183 = scalar_lea.vmem [#allocation2], %s182
        // Predicated region
        $region52: #{low_rank_conv2d_forward.1} parent=50 // pred_check
          %p184 = pneg %p35
        $region53: #{low_rank_conv2d_forward.1} parent=50 // pred_check_branch
          %186 = sbr.rel (%p184) target = $region55
        $region54: #{low_rank_conv2d_forward.1} parent=50 // pred_region
          _
        $region55: #{low_rank_conv2d_forward.1} parent=50 // pred_fallthru
          _
        %s187 = sand.u32 %s22, 1
        %s188 = sand.u32 %s22, 1
        %s189 = smul.addr %s188, 80
        %s190 = scalar_lea.vmem [#allocation2], %s189
        %p191 = pneg %p35
        %p192 = pneg %p32
        %p193 = pneg %p56
        %p194 = pneg %p53
        %p195 = pneg %p77
        %p196 = pneg %p74
        %p197 = pneg %p103
        %p198 = pneg %p100
        %s199 = smul.u32 2, %s14
        %p200 = scmp.lt.s32.totalorder %s199, 3
        %s201 = scalar_select %p200, %s199, 3
        %s202 = smul.addr %s201, 8
        %s203 = scalar_lea.vmem %s3, %s202
        %s204 = smul.u32 2, %s14
        %s205 = smul.u32 2, %s14
        %p206 = scmp.lt.s32.totalorder %s205, 3
        %s207 = scalar_select %p206, %s205, 3
        %s208 = smul.addr %s207, 8
        %s209 = scalar_lea.vmem %s3, %s208
        %s210 = smul.u32 2, %s14
        %v211 = vld [vmem:[%s1] sm:$0xff]
        %v212 = vld [vmem:[%s183] sm:$0xff]
        %v213 = vld [vmem:[%s183 + $0x8] sm:$0xff]
        %v214 = vld [vmem:[%s183 + $0x10] sm:$0xff]
        %v215 = vld [vmem:[%s183 + $0x18] sm:$0xff]
        %v216 = vld [vmem:[%s183 + $0x20] sm:$0xff]
        %v217 = vld [vmem:[%s183 + $0x28] sm:$0xff]
        %v218 = vld [vmem:[%s183 + $0x30] sm:$0xff]
        %v219 = vld [vmem:[%s183 + $0x38] sm:$0xff]
        %v220 = vld [vmem:[%s183 + $0x40] sm:$0xf]
        %v221 = vld [vmem:[%s183 + $0x48] sm:$0xf]
        %v222 = vld [vmem:[%s2] sm:$0xff]
        %224 = vset.pattern.permute.xlu0 0
        %225 = vperm.xlu0 %224, %v222
        %v226 = vpop.permute.xlu0 %225
        %vm228 = vcmask 293888
        %v230 = vsel %vm228, %v211, 0
        %vm232 = vcmask 1043456
        %v234 = vsel %vm232, %v220, 0
        %v237 = vsel %vm232, %v221, 0
        %239 = vmatprep.subr.mxu0 0.0
        %240 = vmatpush1.msra.mxu0 0.0
        %241 = vmatprep.subr.mxu0 0.0
        %242 = vmatpush1.msra.mxu0 0.0
        %243 = vmatprep.subr.mxu0 0.0
        %244 = vmatpush1.msra.mxu0 0.0
        %245 = vmatprep.subr.mxu0 0.0
        %246 = vmatpush1.msra.mxu0 0.0
        %247 = vmatprep.subr.mxu0 0.0
        %248 = vmatpush1.msra.mxu0 0.0
        %249 = vmatprep.subr.mxu0 0.0
        %250 = vmatpush1.msra.mxu0 0.0
        %251 = vmatprep.subr.mxu0 0.0
        %252 = vmatpush1.msra.mxu0 0.0
        %253 = vmatprep.subr.mxu0 0.0
        %254 = vmatpush1.msra.mxu0 0.0
        %255 = vmatprep.subr.mxu0 0.0
        %256 = vmatpush1.msra.mxu0 0.0
        %257 = vmatprep.subr.mxu0 0.0
        %258 = vmatpush1.msra.mxu0 0.0
        %259 = vmatprep.subr.mxu0 0.0
        %260 = vmatpush1.msra.mxu0 0.0
        %261 = vmatprep.subr.mxu0 %v237
        %262 = vmatpush1.msra.mxu0 %v234
        %263 = vmatprep.subr.mxu0 %v219
        %264 = vmatpush1.msra.mxu0 %v218
        %265 = vmatprep.subr.mxu0 %v217
        %266 = vmatpush1.msra.mxu0 %v216
        %267 = vmatprep.subr.mxu0 %v215
        %268 = vmatpush1.msra.mxu0 %v214
        %269 = vmatprep.subr.mxu0 %v213
        %270 = vmatpush1.msra.mxu0 %v212
        %271 = vmatprep.subr.mxu0 0.0
        %272 = vmatpush2.msra.mxu0 0.0
        %273 = vmatprep.subr.mxu0 0.0
        %274 = vmatpush2.msra.mxu0 0.0
        %275 = vmatprep.subr.mxu0 0.0
        %276 = vmatpush2.msra.mxu0 0.0
        %277 = vmatprep.subr.mxu0 0.0
        %278 = vmatpush2.msra.mxu0 0.0
        %279 = vmatprep.subr.mxu0 0.0
        %280 = vmatpush2.msra.mxu0 0.0
        %281 = vmatprep.subr.mxu0 0.0
        %282 = vmatpush2.msra.mxu0 0.0
        %283 = vmatprep.subr.mxu0 0.0
        %284 = vmatpush2.msra.mxu0 0.0
        %285 = vmatprep.subr.mxu0 0.0
        %286 = vmatpush2.msra.mxu0 0.0
        %287 = vmatprep.subr.mxu0 0.0
        %288 = vmatpush2.msra.mxu0 0.0
        %289 = vmatprep.subr.mxu0 0.0
        %290 = vmatpush2.msra.mxu0 0.0
        %291 = vmatprep.subr.mxu0 0.0
        %292 = vmatpush2.msra.mxu0 0.0
        %293 = vmatprep.subr.mxu0 0.0
        %294 = vmatpush2.msra.mxu0 0.0
        %295 = vmatprep.subr.mxu0 0.0
        %296 = vmatpush2.msra.mxu0 0.0
        %297 = vmatprep.subr.mxu0 0.0
        %298 = vmatpush2.msra.mxu0 0.0
        %299 = vmatprep.subr.mxu0 0.0
        %300 = vmatpush2.msra.mxu0 0.0
        %301 = vmatprep.subr.mxu0 0.0
        %302 = vmatpush2.msra.mxu0 0.0
        %303 = vmatprep.mubr.f32.mxu0 0.0
        %304 = vmatmul.mubr.f32.gmra.mxu0 %v230
        %v305 = vpop.f32.mrf.mxu0
        %v306 = vadd.f32 %v226, %v305
        %v307 = vpop.f32.mrf.mxu0
        %v308 = vadd.f32 %v226, %v307
        %309 = vdwg.mxu0
        %310 = vst [vmem:[%s209] sm:$0xff] %v306
        %311 = vst [vmem:[%s209 + $0x8] sm:$0xff] %v308
        %s312 = smul.u32 2, %s14
        %p313 = scmp.lt.s32.totalorder %s312, 3
        %s314 = scalar_select %p313, %s312, 3
        %s315 = smul.addr %s314, 8
        %s316 = scalar_lea.vmem %s3, %s315
        // Predicated region
        $region56: #{low_rank_conv2d_forward.1} parent=50 // pred_check
          %p317 = pneg %p100
        $region57: #{low_rank_conv2d_forward.1} parent=50 // pred_check_branch
          %319 = sbr.rel (%p317) target = $region59
        $region58: #{low_rank_conv2d_forward.1} parent=50 // pred_region
          %s320 = smul.u32 2, %s14
        $region59: #{low_rank_conv2d_forward.1} parent=50 // pred_fallthru
          _
      $region51: #{low_rank_conv2d_forward.1} parent=5 // pred_fallthru
        _
      %p321 = scmp.le.s32.totalorder 2, %s9
      // Predicated region
      $region60: #{low_rank_conv2d_forward.1} parent=5 // pred_check
        %p322 = pneg %p321
      $region61: #{low_rank_conv2d_forward.1} parent=5 // pred_check_branch
        %324 = sbr.rel (%p322) target = $region63
      $region62: #{low_rank_conv2d_forward.1} parent=5 // pred_region
        %s325 = ssub.s32 %s9, 2
        // Predicated region
        $region64: #{low_rank_conv2d_forward.1} parent=62 // pred_check
          %p326 = pneg %p106
        $region65: #{low_rank_conv2d_forward.1} parent=62 // pred_check_branch
          %328 = sbr.rel (%p326) target = $region67
        $region66: #{low_rank_conv2d_forward.1} parent=62 // pred_region
          %s329 = smul.u32 2, %s15
          %p330 = scmp.lt.s32.totalorder %s329, 3
          %s331 = scalar_select %p330, %s329, 3
          %s332 = smul.addr %s331, 8
          %s333 = scalar_lea.vmem %s3, %s332
        $region67: #{low_rank_conv2d_forward.1} parent=62 // pred_fallthru
          _
      $region63: #{low_rank_conv2d_forward.1} parent=5 // pred_fallthru
        _
    $region6: #{low_rank_conv2d_forward.1} parent=1 // loop_footer
      %s13 = sadd.s32 1, %s9
    $region7: #{low_rank_conv2d_forward.1} parent=1 // loop_footer_branch
      %8 = sbr.rel target = $region3
    $region8: #{low_rank_conv2d_forward.1} parent=1 // loop_exit
      _

</llo_original>
